<compile_context>
chip_gen: v6e
topology: v6e:2x2x1
jax: 0.10.0
libtpu: 0.0.40
codegen_flags: <defaults>
</compile_context>

<pallas_src>
import jax
import jax.numpy as jnp
from jax.experimental import pallas as pl
from jax.experimental.pallas import tpu as pltpu


def _round_up(x, m):
    return ((x + m - 1) // m) * m


def _pick_tile(dim_pad, candidates=(512, 256, 128)):
    """Largest candidate tile that evenly divides dim_pad (dim_pad % 128 == 0)."""
    for c in candidates:
        if dim_pad % c == 0:
            return c
    return dim_pad


def _fused_linear_kernel(x_ref, w_ref, b_ref, o_ref, acc_ref):
    # grid = (token/layer, M tiles, N tiles, K tiles); K is the reduction axis.
    kk = pl.program_id(3)

    @pl.when(kk == 0)
    def _init():
        acc_ref[...] = jnp.zeros_like(acc_ref)

    acc_ref[...] += jnp.dot(
        x_ref[...], w_ref[...], preferred_element_type=jnp.float32
    )

    @pl.when(kk == pl.num_programs(3) - 1)
    def _finalize():
        # bias add in f32, single cast on store (lane-dense, unmasked vst).
        o_ref[...] = (acc_ref[...] + b_ref[...]).astype(o_ref.dtype)


def fused_linear(x_stack, w_stack, b_stack, tm, tn, tk):
    """x_stack: (T, M_pad, K_pad), w_stack: (T, K_pad, N_pad), b_stack: (T, 1, N_pad)."""
    T, M_pad, K_pad = x_stack.shape
    N_pad = w_stack.shape[-1]
    grid = (T, M_pad // tm, N_pad // tn, K_pad // tk)
    return pl.pallas_call(
        _fused_linear_kernel,
        out_shape=jax.ShapeDtypeStruct((T, M_pad, N_pad), x_stack.dtype),
        grid_spec=pltpu.PrefetchScalarGridSpec(
            num_scalar_prefetch=0,
            grid=grid,
            in_specs=[
                # activations: (tm, tk) tile of token t
                pl.BlockSpec((None, tm, tk), lambda t, m, n, k: (t, m, k)),
                # weights: (tk, tn) tile of layer t
                pl.BlockSpec((None, tk, tn), lambda t, m, n, k: (t, k, n)),
                # bias: (1, tn) row of layer t
                pl.BlockSpec((None, 1, tn), lambda t, m, n, k: (t, 0, n)),
            ],
            out_specs=pl.BlockSpec((None, tm, tn), lambda t, m, n, k: (t, m, n)),
            scratch_shapes=[pltpu.VMEM((tm, tn), jnp.float32)],
        ),
        compiler_params=pltpu.CompilerParams(
            dimension_semantics=("parallel", "parallel", "parallel", "arbitrary"),
        ),
    )(x_stack, w_stack, b_stack)


def linear_layer_forward(tokens, weights, biases):
    """Pallas equivalent of LinearLayer.forward.

    tokens : list of arrays, each either (B, S, dim_in) or (B, C, H, W) with
             C == dim_in (NCHW, PyTorch convention).
    weights: list of (dim_in, dim_out) arrays (== torch weight transposed).
    biases : list of (dim_out,) arrays.
    Returns a new list (does not mutate the input list like the torch module).
    """
    dim_in, dim_out = weights[0].shape

    # Flatten every token to a (M_i, dim_in) matrix, matching torch semantics.
    # TODO(synk): the CLS-drop slice and the NCHW->token transpose materialize
    # an extra HBM copy in plain JAX; they could be folded into the kernel DMA
    # (S-axis offset in the index_map / dot_general over the C axis).
    flats, metas = [], []
    for t in tokens:
        if t.ndim == 3:
            B, S, _ = t.shape
            x = t[:, 1:, :].reshape(B * (S - 1), dim_in)      # drop CLS token
            metas.append((B, S - 1))
        else:
            B, C, H, W = t.shape
            # NCHW -> (B, H*W, C) token layout (== .view().permute(0, 2, 1))
            x = t.reshape(B, C, H * W).transpose(0, 2, 1).reshape(B * H * W, dim_in)
            metas.append((B, H * W))
        flats.append(x)

    dtype = flats[0].dtype

    # Pad K and N to lane-dense multiples of 128; pad M to the M tile.
    K_pad = _round_up(dim_in, 128)
    N_pad = _round_up(dim_out, 128)
    max_m = max(x.shape[0] for x in flats)
    tm = min(512, _round_up(max_m, 8))
    M_pad = _round_up(max_m, tm)
    tk = _pick_tile(K_pad, candidates=(512, 256, 128))
    tn = _pick_tile(N_pad, candidates=(256, 128))

    x_stack = jnp.stack([
        jnp.pad(x, ((0, M_pad - x.shape[0]), (0, K_pad - dim_in))) for x in flats
    ])
    w_stack = jnp.stack([
        jnp.pad(w.astype(dtype), ((0, K_pad - dim_in), (0, N_pad - dim_out)))
        for w in weights
    ])
    b_stack = jnp.stack([
        jnp.pad(b.astype(jnp.float32), (0, N_pad - dim_out)).reshape(1, N_pad)
        for b in biases
    ])

    y = fused_linear(x_stack, w_stack, b_stack, tm, tn, tk)

    out = []
    for i, (B, rows) in enumerate(metas):
        out.append(y[i, : B * rows, :dim_out].reshape(B, rows, dim_out))
    return out


def reference_forward(tokens, weights, biases):
    """Plain-JAX reference replicating the PyTorch semantics."""
    out = []
    for i, t in enumerate(tokens):
        w, b = weights[i], biases[i]
        if t.ndim == 3:
            x = t[:, 1:, :]
        else:
            B, C, H, W = t.shape
            x = t.reshape(B, C, H * W).transpose(0, 2, 1)
        out.append(jnp.einsum("bsk,kn->bsn", x, w) + b)
    return out


if __name__ == "__main__":
    key = jax.random.PRNGKey(0)

    # Module config: LinearLayer(dim_in=32, dim_out=32, k=2)
    dim_in, dim_out, k = 32, 32, 2

    # Deterministic parameter init (synthetic; mimics nn.Linear shapes).
    keys = jax.random.split(key, 2 * k + 2)
    weights = [
        (jax.random.normal(keys[2 * i], (dim_in, dim_out), jnp.float32)
         / jnp.sqrt(dim_in))
        for i in range(k)
    ]
    biases = [
        jax.random.normal(keys[2 * i + 1], (dim_out,), jnp.float32) * 0.01
        for i in range(k)
    ]

    # Example inputs: one 3D token tensor (B, S, dim_in) and one 4D NCHW
    # feature map (B, C=dim_in, H, W).
    x3d = jax.random.normal(keys[-2], (2, 9, dim_in), jnp.float32)      # B=2, S=9
    x4d = jax.random.normal(keys[-1], (2, dim_in, 4, 4), jnp.float32)   # B=2, H=W=4
    tokens = [x3d, x4d]

    outs = linear_layer_forward(tokens, weights, biases)
    outs = [jax.block_until_ready(o) for o in outs]

    refs = reference_forward(tokens, weights, biases)
    for o, r in zip(outs, refs):
        assert o.shape == r.shape, (o.shape, r.shape)
        assert jnp.allclose(o, r, atol=1e-4, rtol=1e-4)

    print("KERNEL_OK")
</pallas_src>

<mosaic_0001>
module attributes {stable_mosaic.version = 11 : i64} {
  func.func @_fused_linear_kernel(%arg0: i32, %arg1: i32, %arg2: i32, %arg3: i32, %arg4: memref<1x32x128xf32, #tpu.memory_space<vmem>>, %arg5: memref<1x128x128xf32, #tpu.memory_space<vmem>>, %arg6: memref<1x1x128xf32, #tpu.memory_space<vmem>>, %arg7: memref<1x32x128xf32, #tpu.memory_space<vmem>>, %arg8: memref<32x128xf32, #tpu.memory_space<vmem>>) attributes {dimension_semantics = [#tpu.dimension_semantics<parallel>, #tpu.dimension_semantics<parallel>, #tpu.dimension_semantics<parallel>, #tpu.dimension_semantics<arbitrary>], iteration_bounds = array<i64: 2, 1, 1, 1>, scalar_prefetch = 0 : i64, scratch_operands = 1 : i64, tpu.core_type = #tpu.core_type<tc>, window_params = [{transform_indices = @transform_0, window_bounds = array<i64: 1, 32, 128>}, {transform_indices = @transform_1, window_bounds = array<i64: 1, 128, 128>}, {transform_indices = @transform_2, window_bounds = array<i64: 1, 1, 128>}, {transform_indices = @transform_3, window_bounds = array<i64: 1, 32, 128>}]} {
    %c0_i32 = arith.constant 0 : i32
    %0 = arith.cmpi eq, %arg3, %c0_i32 : i32
    %1 = arith.extui %0 : i1 to i32
    %c0_i32_0 = arith.constant 0 : i32
    %2 = arith.cmpi ne, %1, %c0_i32_0 : i32
    scf.if %2 {
      %cst_12 = arith.constant 0.000000e+00 : f32
      %14 = vector.broadcast %cst_12 : f32 to vector<32x128xf32>
      %c0_13 = arith.constant 0 : index
      %c0_14 = arith.constant 0 : index
      %15 = vector.load %arg8[%c0_13, %c0_14] : memref<32x128xf32, #tpu.memory_space<vmem>>, vector<32x128xf32>
      tpu.vector_store %arg8[%c0_13, %c0_14], %14 {strides = array<i32>} : memref<32x128xf32, #tpu.memory_space<vmem>>, vector<32x128xf32>,
    } else {
    }
    %c0 = arith.constant 0 : index
    %c0_1 = arith.constant 0 : index
    %3 = vector.load %arg8[%c0, %c0_1] : memref<32x128xf32, #tpu.memory_space<vmem>>, vector<32x128xf32>
    %c0_2 = arith.constant 0 : index
    %c0_3 = arith.constant 0 : index
    %c0_4 = arith.constant 0 : index
    %4 = vector.load %arg4[%c0_2, %c0_3, %c0_4] : memref<1x32x128xf32, #tpu.memory_space<vmem>>, vector<1x32x128xf32>
    %5 = vector.shape_cast %4 : vector<1x32x128xf32> to vector<32x128xf32>
    %c0_5 = arith.constant 0 : index
    %c0_6 = arith.constant 0 : index
    %c0_7 = arith.constant 0 : index
    %6 = vector.load %arg5[%c0_5, %c0_6, %c0_7] : memref<1x128x128xf32, #tpu.memory_space<vmem>>, vector<1x128x128xf32>
    %7 = vector.shape_cast %6 : vector<1x128x128xf32> to vector<128x128xf32>
    %cst = arith.constant dense<0.000000e+00> : vector<32x128xf32>
    %8 = tpu.matmul %5, %7, %cst {dimension_numbers = #tpu.dot_dimension_numbers<[1], [0], [0], [1], [0, 0, 1, 1], [], []>} : vector<32x128xf32>, vector<128x128xf32>, vector<32x128xf32> -> vector<32x128xf32>
    %9 = arith.addf %3, %8 : vector<32x128xf32>
    %c0_8 = arith.constant 0 : index
    %c0_9 = arith.constant 0 : index
    %10 = vector.load %arg8[%c0_8, %c0_9] : memref<32x128xf32, #tpu.memory_space<vmem>>, vector<32x128xf32>
    tpu.vector_store %arg8[%c0_8, %c0_9], %9 {strides = array<i32>} : memref<32x128xf32, #tpu.memory_space<vmem>>, vector<32x128xf32>,
    %c0_i32_10 = arith.constant 0 : i32
    %11 = arith.cmpi eq, %arg3, %c0_i32_10 : i32
    %12 = arith.extui %11 : i1 to i32
    %c0_i32_11 = arith.constant 0 : i32
    %13 = arith.cmpi ne, %12, %c0_i32_11 : i32
    scf.if %13 {
      %c0_12 = arith.constant 0 : index
      %c0_13 = arith.constant 0 : index
      %14 = vector.load %arg8[%c0_12, %c0_13] : memref<32x128xf32, #tpu.memory_space<vmem>>, vector<32x128xf32>
      %c0_14 = arith.constant 0 : index
      %c0_15 = arith.constant 0 : index
      %c0_16 = arith.constant 0 : index
      %15 = vector.load %arg6[%c0_14, %c0_15, %c0_16] : memref<1x1x128xf32, #tpu.memory_space<vmem>>, vector<1x1x128xf32>
      %16 = vector.shape_cast %15 : vector<1x1x128xf32> to vector<1x128xf32>
      %17 = vector.broadcast %16 : vector<1x128xf32> to vector<32x128xf32>
      %18 = arith.addf %14, %17 : vector<32x128xf32>
      %c0_17 = arith.constant 0 : index
      %c0_18 = arith.constant 0 : index
      %c0_19 = arith.constant 0 : index
      %19 = vector.load %arg7[%c0_17, %c0_18, %c0_19] : memref<1x32x128xf32, #tpu.memory_space<vmem>>, vector<1x32x128xf32>
      %20 = vector.shape_cast %19 : vector<1x32x128xf32> to vector<32x128xf32>
      %21 = vector.shape_cast %18 : vector<32x128xf32> to vector<1x32x128xf32>
      tpu.vector_store %arg7[%c0_17, %c0_18, %c0_19], %21 {strides = array<i32>} : memref<1x32x128xf32, #tpu.memory_space<vmem>>, vector<1x32x128xf32>,
    } else {
    }
    return
  }
  func.func @transform_0(%arg0: i32, %arg1: i32, %arg2: i32, %arg3: i32) -> (i32, i32, i32) {
    %c0_i32 = arith.constant 0 : i32
    return %arg0, %arg1, %arg3 : i32, i32, i32
  }
  func.func @transform_1(%arg0: i32, %arg1: i32, %arg2: i32, %arg3: i32) -> (i32, i32, i32) {
    %c0_i32 = arith.constant 0 : i32
    return %arg0, %arg3, %arg2 : i32, i32, i32
  }
  func.func @transform_2(%arg0: i32, %arg1: i32, %arg2: i32, %arg3: i32) -> (i32, i32, i32) {
    %c0_i32 = arith.constant 0 : i32
    %c0_i32_0 = arith.constant 0 : i32
    return %arg0, %c0_i32, %arg2 : i32, i32, i32
  }
  func.func @transform_3(%arg0: i32, %arg1: i32, %arg2: i32, %arg3: i32) -> (i32, i32, i32) {
    %c0_i32 = arith.constant 0 : i32
    return %arg0, %arg1, %arg2 : i32, i32, i32
  }
}

</mosaic_0001>

<llo_original>
// kernel: tpu_custom_call.1
$region0: #{tpu_custom_call.1}
  #allocation0 [shape = 'u32[]', space=smem, size = 0x4, offset = 0x4, fixed_abs, tag = 'smem constant byte address 0x4 - core index']
  #allocation1 [shape = 'u32[144,128]{1,0:T(1,128)}', space=vmem, size = 0x12000, scoped, tag = 'internal scratch']
  #allocation2 [shape = 'f32[32,128]{1,0:T(8,128)}', space=vmem, size = 0x4000, scoped, tag = 'scratch operand']
  %s0 = inlined_call_operand.hbm [shape: f32[2,32,128], index: 0, kind: input, shape index: {}]
  %s1 = inlined_call_operand.hbm [shape: f32[2,128,128], index: 1, kind: input, shape index: {}]
  %s2 = inlined_call_operand.vmem [shape: f32[2,1,128], index: 2, kind: input, shape index: {}]
  %s3 = inlined_call_operand.hbm [shape: f32[2,32,128], index: 3, kind: output, shape index: {}]
  %s4 = sld [smem:[#allocation0]]
  $region61: #{tpu_custom_call.1} parent=0
    _
  %s6 = ssub.s32 1, %s4
  %s7 = scalar_select 0, %s6, %s4
  $region1: #{tpu_custom_call.1} parent=0
    #allocation3 [shape = 'u8[32768]{0}', space=vmem, size = 0x8000, scoped, tag = 'input window, operand 0']
    #allocation4 [shape = 's32[2]{0}', space=sflag, size = 0x8, scoped, tag = 'scoped memory for tpu_custom_call.1']
    #allocation5 [shape = 's32[2]{0}', space=sflag, size = 0x8, scoped, tag = 'scoped memory for tpu_custom_call.1']
    #allocation6 [shape = 'u8[131072]{0}', space=vmem, size = 0x20000, scoped, tag = 'input window, operand 1']
    #allocation7 [shape = 's32[2]{0}', space=sflag, size = 0x8, scoped, tag = 'scoped memory for tpu_custom_call.1']
    #allocation8 [shape = 'u8[32768]{0}', space=vmem, size = 0x8000, scoped, tag = 'output window, operand 0']
    %8 = vsyncpa [#allocation4], 0
    %s9 = scalar_lea.sflag [#allocation4], 1
    %10 = vsyncpa %s9, 0
    %11 = vsyncpa [#allocation7], 0
    %s12 = scalar_lea.sflag [#allocation7], 1
    %13 = vsyncpa %s12, 0
    %14 = vsyncpa [#allocation5], 0
    %s15 = scalar_lea.sflag [#allocation5], 1
    %16 = vsyncpa %s15, 0
    loop: start=0, step=1, limit=4
    $region2: #{tpu_custom_call.1} parent=1 // loop_pre_header
      _
    $region3: #{tpu_custom_call.1} parent=1 // loop_header
      %s18 = sphi 0, %s22
      %p19 = scmp.ge.s32.totalorder %s18, 4
      %s25 = sphi 0, %s51
      %s26 = sphi 0, %s47
      %s27 = sphi 0, %s43
      %s28 = sphi 0, %s39
      %s29 = sphi 0, %s25
      %s30 = sphi 0, %s26
      %s31 = sphi 0, %s27
      %s32 = sphi 0, %s28
      %s33 = sphi 0, %s29
      %s34 = sphi 0, %s30
      %s35 = sphi 0, %s31
      %s36 = sphi 0, %s32
      %s58 = sphi 0, %s60
      %s61 = sphi 0, %s58
      %s62 = sphi 0, %s61
      %s78 = sphi 0, %s62
      %s88 = sphi 0, %s90
      %s91 = sphi 0, %s88
      %s92 = sphi 0, %s91
      %s108 = sphi 0, %s92
      %s116 = sphi 0, %s118
      %s119 = sphi 0, %s116
      %s120 = sphi 0, %s119
      %s136 = sphi 0, %s120
      %s146 = sphi 0, %s148
      %s149 = sphi 0, %s146
      %s150 = sphi 0, %s149
      %s166 = sphi 0, %s150
    $region4: #{tpu_custom_call.1} parent=1 // loop_header_branch
      %21 = sbr.rel (%p19) target = $region8
    $region5: #{tpu_custom_call.1} parent=1 // loop_body
      %s23 = ssub.s32 %s18, 1
      %s24 = ssub.s32 %s18, 2
      %s37 = sadd.s32 1, %s28
      %p38 = scmp.ge.s32.totalorder %s37, 1
      %s39 = scalar_select %p38, 0, %s37
      %s40 = sadd.s32 1, %s27
      %s41 = scalar_select %p38, %s40, %s27
      %p42 = scmp.ge.s32.totalorder %s41, 1
      %s43 = scalar_select %p42, 0, %s41
      %s44 = sadd.s32 1, %s26
      %s45 = scalar_select %p42, %s44, %s26
      %p46 = scmp.ge.s32.totalorder %s45, 1
      %s47 = scalar_select %p46, 0, %s45
      %s48 = sadd.s32 1, %s25
      %s49 = scalar_select %p46, %s48, %s25
      %p50 = scmp.ge.s32.totalorder %s49, 2
      %s51 = scalar_select %p50, 0, %s49
      %s52 = ssub.s32 %s25, %s51
      %s53 = ssub.s32 %s26, %s47
      %s54 = sor.u32 %s52, %s53
      %s55 = ssub.s32 %s28, %s39
      %s56 = sor.u32 %s54, %s55
      %p57 = scmp.eq.s32.totalorder %s56, 0
      %s59 = sadd.s32 %s58, 1
      %s60 = scalar_select %p57, %s58, %s59
      %p63 = pneg %p57
      %p64 = scmp.eq.s32.totalorder %s18, 1
      %p65 = por %p63, %p64
      %p66 = scmp.ne.s32.totalorder %s58, %s61
      %p67 = scmp.eq.s32.totalorder %s18, 0
      %p68 = por %p66, %p67
      %p69 = scmp.ne.s32.totalorder %s58, %s61
      %p70 = scmp.eq.s32.totalorder %s23, 1
      %p71 = por %p69, %p70
      %p72 = scmp.ne.s32.totalorder %s61, %s62
      %p73 = scmp.eq.s32.totalorder %s23, 0
      %p74 = por %p72, %p73
      %p75 = scmp.ne.s32.totalorder %s61, %s62
      %p76 = scmp.eq.s32.totalorder %s24, 1
      %p77 = por %p75, %p76
      %p79 = scmp.ne.s32.totalorder %s62, %s78
      %p80 = scmp.eq.s32.totalorder %s24, 0
      %p81 = por %p79, %p80
      %s82 = ssub.s32 %s25, %s51
      %s83 = ssub.s32 %s28, %s39
      %s84 = sor.u32 %s82, %s83
      %s85 = ssub.s32 %s27, %s43
      %s86 = sor.u32 %s84, %s85
      %p87 = scmp.eq.s32.totalorder %s86, 0
      %s89 = sadd.s32 %s88, 1
      %s90 = scalar_select %p87, %s88, %s89
      %p93 = pneg %p87
      %p94 = scmp.eq.s32.totalorder %s18, 1
      %p95 = por %p93, %p94
      %p96 = scmp.ne.s32.totalorder %s88, %s91
      %p97 = scmp.eq.s32.totalorder %s18, 0
      %p98 = por %p96, %p97
      %p99 = scmp.ne.s32.totalorder %s88, %s91
      %p100 = scmp.eq.s32.totalorder %s23, 1
      %p101 = por %p99, %p100
      %p102 = scmp.ne.s32.totalorder %s91, %s92
      %p103 = scmp.eq.s32.totalorder %s23, 0
      %p104 = por %p102, %p103
      %p105 = scmp.ne.s32.totalorder %s91, %s92
      %p106 = scmp.eq.s32.totalorder %s24, 1
      %p107 = por %p105, %p106
      %p109 = scmp.ne.s32.totalorder %s92, %s108
      %p110 = scmp.eq.s32.totalorder %s24, 0
      %p111 = por %p109, %p110
      %s112 = ssub.s32 %s25, %s51
      %s113 = ssub.s32 %s27, %s43
      %s114 = sor.u32 %s112, %s113
      %p115 = scmp.eq.s32.totalorder %s114, 0
      %s117 = sadd.s32 %s116, 1
      %s118 = scalar_select %p115, %s116, %s117
      %p121 = pneg %p115
      %p122 = scmp.eq.s32.totalorder %s18, 1
      %p123 = por %p121, %p122
      %p124 = scmp.ne.s32.totalorder %s116, %s119
      %p125 = scmp.eq.s32.totalorder %s18, 0
      %p126 = por %p124, %p125
      %p127 = scmp.ne.s32.totalorder %s116, %s119
      %p128 = scmp.eq.s32.totalorder %s23, 1
      %p129 = por %p127, %p128
      %p130 = scmp.ne.s32.totalorder %s119, %s120
      %p131 = scmp.eq.s32.totalorder %s23, 0
      %p132 = por %p130, %p131
      %p133 = scmp.ne.s32.totalorder %s119, %s120
      %p134 = scmp.eq.s32.totalorder %s24, 1
      %p135 = por %p133, %p134
      %p137 = scmp.ne.s32.totalorder %s120, %s136
      %p138 = scmp.eq.s32.totalorder %s24, 0
      %p139 = por %p137, %p138
      %s140 = ssub.s32 %s25, %s51
      %s141 = ssub.s32 %s26, %s47
      %s142 = sor.u32 %s140, %s141
      %s143 = ssub.s32 %s27, %s43
      %s144 = sor.u32 %s142, %s143
      %p145 = scmp.eq.s32.totalorder %s144, 0
      %s147 = sadd.s32 %s146, 1
      %s148 = scalar_select %p145, %s146, %s147
      %p151 = pneg %p145
      %p152 = scmp.eq.s32.totalorder %s18, 1
      %p153 = por %p151, %p152
      %p154 = scmp.ne.s32.totalorder %s146, %s149
      %p155 = scmp.eq.s32.totalorder %s18, 0
      %p156 = por %p154, %p155
      %p157 = scmp.ne.s32.totalorder %s146, %s149
      %p158 = scmp.eq.s32.totalorder %s23, 1
      %p159 = por %p157, %p158
      %p160 = scmp.ne.s32.totalorder %s149, %s150
      %p161 = scmp.eq.s32.totalorder %s23, 0
      %p162 = por %p160, %p161
      %p163 = scmp.ne.s32.totalorder %s149, %s150
      %p164 = scmp.eq.s32.totalorder %s24, 1
      %p165 = por %p163, %p164
      %p167 = scmp.ne.s32.totalorder %s150, %s166
      %p168 = scmp.eq.s32.totalorder %s24, 0
      %p169 = por %p167, %p168
      %p170 = scmp.le.s32.totalorder 1, %s18
      %p171 = scmp.lt.s32.totalorder %s18, 3
      %p172 = pnand %p170, %p171
      %p173 = pneg %p172
      // Predicated region
      $region9: #{tpu_custom_call.1} parent=5 // pred_check
        _
      $region10: #{tpu_custom_call.1} parent=5 // pred_check_branch
        %175 = sbr.rel (%p172) target = $region12
      $region11: #{tpu_custom_call.1} parent=5 // pred_region
        %s176 = ssub.s32 %s18, 1
      $region12: #{tpu_custom_call.1} parent=5 // pred_fallthru
        _
      %p177 = scmp.lt.s32.totalorder %s18, 2
      // Predicated region
      $region13: #{tpu_custom_call.1} parent=5 // pred_check
        %p178 = pneg %p177
      $region14: #{tpu_custom_call.1} parent=5 // pred_check_branch
        %180 = sbr.rel (%p178) target = $region16
      $region15: #{tpu_custom_call.1} parent=5 // pred_region
        // Predicated region
        $region17: #{tpu_custom_call.1} parent=15 // pred_check
          %p181 = pneg %p68
        $region18: #{tpu_custom_call.1} parent=15 // pred_check_branch
          %183 = sbr.rel (%p181) target = $region20
        $region19: #{tpu_custom_call.1} parent=15 // pred_region
          %s184 = sand.u32 %s58, 1
          %s185 = scalar_lea.sflag [#allocation4], %s184
          %s186 = sand.u32 %s58, 1
          %s187 = smul.addr %s186, 32
          %s188 = scalar_lea.vmem [#allocation3], %s187
          %s189 = smul.u32 4, %s26
          %s191 = ssub.s32 512, 512
          %192 = vsyncadd %s185, %s191
          %s193 = sadd.s32 %s28, %s189
          %s194 = smul.addr %s25, 4
          %s195 = sadd.s32 %s193, %s194
          %s196 = smul.addr %s195, 128
          %s197 = scalar_lea.hbm %s0, %s196
          %s198 = sshll.u32 %s188, 4
          %s199 = int_to_ptr.vmem [resolvable:$true] %s198
          %204 = dma.hbm_to_vmem [thread:$0]  %s197, 512, %s199, %s185, 128, 128, 8
        $region20: #{tpu_custom_call.1} parent=15 // pred_fallthru
          _
        // Predicated region
        $region21: #{tpu_custom_call.1} parent=15 // pred_check
          %p205 = pneg %p98
        $region22: #{tpu_custom_call.1} parent=15 // pred_check_branch
          %207 = sbr.rel (%p205) target = $region24
        $region23: #{tpu_custom_call.1} parent=15 // pred_region
          %s208 = sand.u32 %s88, 1
          %s209 = scalar_lea.sflag [#allocation7], %s208
          %s210 = sand.u32 %s88, 1
          %s211 = smul.addr %s210, 128
          %s212 = scalar_lea.vmem [#allocation6], %s211
          %s213 = smul.u32 16, %s28
          %s215 = ssub.s32 2048, 2048
          %216 = vsyncadd %s209, %s215
          %s217 = sadd.s32 %s27, %s213
          %s218 = smul.addr %s25, 16
          %s219 = sadd.s32 %s217, %s218
          %s220 = smul.addr %s219, 128
          %s221 = scalar_lea.hbm %s1, %s220
          %s222 = sshll.u32 %s212, 4
          %s223 = int_to_ptr.vmem [resolvable:$true] %s222
          %228 = dma.hbm_to_vmem [thread:$0]  %s221, 2048, %s223, %s209, 128, 128, 8
        $region24: #{tpu_custom_call.1} parent=15 // pred_fallthru
          _
        // Predicated region
        $region25: #{tpu_custom_call.1} parent=15 // pred_check
          %p229 = pneg %p126
        $region26: #{tpu_custom_call.1} parent=15 // pred_check_branch
          %231 = sbr.rel (%p229) target = $region28
        $region27: #{tpu_custom_call.1} parent=15 // pred_region
          %p232 = scmp.lt.s32.totalorder %s25, 1
          %s233 = scalar_select %p232, %s25, 1
          %p234 = scmp.lt.s32.totalorder %s27, 0
          %s235 = scalar_select %p234, %s27, 0
          %s236 = sadd.s32 %s235, %s233
          %s237 = scalar_lea.vmem %s2, %s236
        $region28: #{tpu_custom_call.1} parent=15 // pred_fallthru
          _
      $region16: #{tpu_custom_call.1} parent=5 // pred_fallthru
        _
      %p238 = scmp.le.s32.totalorder 1, %s18
      %p239 = scmp.lt.s32.totalorder %s18, 3
      %p240 = pnand %p238, %p239
      %p241 = pneg %p240
      // Predicated region
      $region29: #{tpu_custom_call.1} parent=5 // pred_check
        _
      $region30: #{tpu_custom_call.1} parent=5 // pred_check_branch
        %243 = sbr.rel (%p240) target = $region32
      $region31: #{tpu_custom_call.1} parent=5 // pred_region
        %s244 = ssub.s32 %s18, 1
        %s245 = sand.u32 %s61, 1
        %s246 = scalar_lea.sflag [#allocation4], %s245
        %s247 = sand.u32 %s61, 1
        %s248 = smul.addr %s247, 32
        %s249 = scalar_lea.vmem [#allocation3], %s248
        // Predicated region
        $region33: #{tpu_custom_call.1} parent=31 // pred_check
          %p250 = pneg %p74
        $region34: #{tpu_custom_call.1} parent=31 // pred_check_branch
          %252 = sbr.rel (%p250) target = $region36
        $region35: #{tpu_custom_call.1} parent=31 // pred_region
          %253 = dma.done %s246, 512
        $region36: #{tpu_custom_call.1} parent=31 // pred_fallthru
          _
        %s254 = sand.u32 %s91, 1
        %s255 = scalar_lea.sflag [#allocation7], %s254
        %s256 = sand.u32 %s91, 1
        %s257 = smul.addr %s256, 128
        %s258 = scalar_lea.vmem [#allocation6], %s257
        // Predicated region
        $region37: #{tpu_custom_call.1} parent=31 // pred_check
          %p259 = pneg %p104
        $region38: #{tpu_custom_call.1} parent=31 // pred_check_branch
          %261 = sbr.rel (%p259) target = $region40
        $region39: #{tpu_custom_call.1} parent=31 // pred_region
          %262 = dma.done %s255, 2048
        $region40: #{tpu_custom_call.1} parent=31 // pred_fallthru
          _
        %s263 = sand.u32 %s61, 1
        %s264 = scalar_lea.sflag [#allocation4], %s263
        %s265 = sand.u32 %s61, 1
        %s266 = smul.addr %s265, 32
        %s267 = scalar_lea.vmem [#allocation3], %s266
        %p268 = pneg %p74
        %p269 = pneg %p71
        %s270 = sand.u32 %s91, 1
        %s271 = scalar_lea.sflag [#allocation7], %s270
        %s272 = sand.u32 %s91, 1
        %s273 = smul.addr %s272, 128
        %s274 = scalar_lea.vmem [#allocation6], %s273
        %p275 = pneg %p104
        %p276 = pneg %p101
        %p277 = scmp.lt.s32.totalorder %s29, 1
        %s278 = scalar_select %p277, %s29, 1
        %p279 = scmp.lt.s32.totalorder %s31, 0
        %s280 = scalar_select %p279, %s31, 0
        %s281 = sadd.s32 %s280, %s278
        %s282 = scalar_lea.vmem %s2, %s281
        %p283 = pneg %p132
        %p284 = pneg %p129
        %p285 = pneg %p162
        %p286 = pneg %p159
        %s287 = sand.u32 %s149, 1
        %s288 = scalar_lea.sflag [#allocation5], %s287
        %s289 = sand.u32 %s149, 1
        %s290 = smul.addr %s289, 32
        %s291 = scalar_lea.vmem [#allocation8], %s290
        %s292 = smul.u32 4, %s30
        %s293 = smul.u32 16, %s32
        %p294 = scmp.lt.s32.totalorder %s29, 1
        %s295 = scalar_select %p294, %s29, 1
        %p296 = scmp.lt.s32.totalorder %s31, 0
        %s297 = scalar_select %p296, %s31, 0
        %s298 = sadd.s32 %s297, %s295
        %s299 = scalar_lea.vmem %s2, %s298
        %s300 = smul.u32 4, %s30
        %p301 = scmp.eq.s32.totalorder %s32, 0
        // Predicated region
        $region41: #{tpu_custom_call.1} parent=31 // pred_check
          %p302 = pneg %p301
        $region42: #{tpu_custom_call.1} parent=31 // pred_check_branch
          %304 = sbr.rel (%p302) target = $region44
        $region43: #{tpu_custom_call.1} parent=31 // pred_region
          %305 = vst [vmem:[#allocation2] sm:$0xff] 0.0
          %306 = vst [vmem:[#allocation2 + $0x8] sm:$0xff] 0.0
          %307 = vst [vmem:[#allocation2 + $0x10] sm:$0xff] 0.0
          %308 = vst [vmem:[#allocation2 + $0x18] sm:$0xff] 0.0
        $region44: #{tpu_custom_call.1} parent=31 // pred_fallthru
          _
        %v309 = vld [vmem:[#allocation2] sm:$0xff]
        %v310 = vld [vmem:[#allocation2 + $0x8] sm:$0xff]
        %v311 = vld [vmem:[#allocation2 + $0x10] sm:$0xff]
        %v312 = vld [vmem:[#allocation2 + $0x18] sm:$0xff]
        %v313 = vld [vmem:[%s249] sm:$0xff]
        %v314 = vld [vmem:[%s249 + $0x8] sm:$0xff]
        %v315 = vld [vmem:[%s249 + $0x10] sm:$0xff]
        %v316 = vld [vmem:[%s249 + $0x18] sm:$0xff]
        %v317 = vld [vmem:[%s258] sm:$0xff]
        %v318 = vld [vmem:[%s258 + $0x8] sm:$0xff]
        %v319 = vld [vmem:[%s258 + $0x10] sm:$0xff]
        %v320 = vld [vmem:[%s258 + $0x18] sm:$0xff]
        %v321 = vld [vmem:[%s258 + $0x20] sm:$0xff]
        %v322 = vld [vmem:[%s258 + $0x28] sm:$0xff]
        %v323 = vld [vmem:[%s258 + $0x30] sm:$0xff]
        %v324 = vld [vmem:[%s258 + $0x38] sm:$0xff]
        %v325 = vld [vmem:[%s258 + $0x40] sm:$0xff]
        %v326 = vld [vmem:[%s258 + $0x48] sm:$0xff]
        %v327 = vld [vmem:[%s258 + $0x50] sm:$0xff]
        %v328 = vld [vmem:[%s258 + $0x58] sm:$0xff]
        %v329 = vld [vmem:[%s258 + $0x60] sm:$0xff]
        %v330 = vld [vmem:[%s258 + $0x68] sm:$0xff]
        %v331 = vld [vmem:[%s258 + $0x70] sm:$0xff]
        %v332 = vld [vmem:[%s258 + $0x78] sm:$0xff]
        %333 = vmatprep.subr.mxu0 0.0
        %334 = vmatpush1.msra.mxu0 %v332
        %335 = vmatprep.subr.mxu0 0.0
        %336 = vmatpush1.msra.mxu0 %v331
        %337 = vmatprep.subr.mxu0 0.0
        %338 = vmatpush1.msra.mxu0 %v330
        %339 = vmatprep.subr.mxu0 0.0
        %340 = vmatpush1.msra.mxu0 %v329
        %341 = vmatprep.subr.mxu0 0.0
        %342 = vmatpush1.msra.mxu0 %v328
        %343 = vmatprep.subr.mxu0 0.0
        %344 = vmatpush1.msra.mxu0 %v327
        %345 = vmatprep.subr.mxu0 0.0
        %346 = vmatpush1.msra.mxu0 %v326
        %347 = vmatprep.subr.mxu0 0.0
        %348 = vmatpush1.msra.mxu0 %v325
        %349 = vmatprep.subr.mxu0 0.0
        %350 = vmatpush1.msra.mxu0 %v324
        %351 = vmatprep.subr.mxu0 0.0
        %352 = vmatpush1.msra.mxu0 %v323
        %353 = vmatprep.subr.mxu0 0.0
        %354 = vmatpush1.msra.mxu0 %v322
        %355 = vmatprep.subr.mxu0 0.0
        %356 = vmatpush1.msra.mxu0 %v321
        %357 = vmatprep.subr.mxu0 0.0
        %358 = vmatpush1.msra.mxu0 %v320
        %359 = vmatprep.subr.mxu0 0.0
        %360 = vmatpush1.msra.mxu0 %v319
        %361 = vmatprep.subr.mxu0 0.0
        %362 = vmatpush1.msra.mxu0 %v318
        %363 = vmatprep.subr.mxu0 0.0
        %364 = vmatpush1.msra.mxu0 %v317
        %365 = vmatprep.subr.mxu0 0.0
        %366 = vmatpush2.msra.mxu0 0.0
        %367 = vmatprep.subr.mxu0 0.0
        %368 = vmatpush2.msra.mxu0 0.0
        %369 = vmatprep.subr.mxu0 0.0
        %370 = vmatpush2.msra.mxu0 0.0
        %371 = vmatprep.subr.mxu0 0.0
        %372 = vmatpush2.msra.mxu0 0.0
        %373 = vmatprep.subr.mxu0 0.0
        %374 = vmatpush2.msra.mxu0 0.0
        %375 = vmatprep.subr.mxu0 0.0
        %376 = vmatpush2.msra.mxu0 0.0
        %377 = vmatprep.subr.mxu0 0.0
        %378 = vmatpush2.msra.mxu0 0.0
        %379 = vmatprep.subr.mxu0 0.0
        %380 = vmatpush2.msra.mxu0 0.0
        %381 = vmatprep.subr.mxu0 0.0
        %382 = vmatpush2.msra.mxu0 0.0
        %383 = vmatprep.subr.mxu0 0.0
        %384 = vmatpush2.msra.mxu0 0.0
        %385 = vmatprep.subr.mxu0 0.0
        %386 = vmatpush2.msra.mxu0 0.0
        %387 = vmatprep.subr.mxu0 0.0
        %388 = vmatpush2.msra.mxu0 0.0
        %389 = vmatprep.subr.mxu0 0.0
        %390 = vmatpush2.msra.mxu0 0.0
        %391 = vmatprep.subr.mxu0 0.0
        %392 = vmatpush2.msra.mxu0 0.0
        %393 = vmatprep.subr.mxu0 0.0
        %394 = vmatpush2.msra.mxu0 0.0
        %395 = vmatprep.subr.mxu0 0.0
        %396 = vmatpush2.msra.mxu0 0.0
        %397 = vmatprep.mubr.f32.mxu0 0.0
        %398 = vmatmul.mubr.f32.gmra.mxu0 %v313
        %v399 = vpop.f32.mrf.mxu0
        %v400 = vadd.f32 0.0, %v399
        %v401 = vpop.f32.mrf.mxu0
        %402 = vmatprep.mubr.f32.mxu0 0.0
        %403 = vmatmul.mubr.f32.gmra.mxu0 %v314
        %v404 = vpop.f32.mrf.mxu0
        %v405 = vadd.f32 0.0, %v404
        %v406 = vpop.f32.mrf.mxu0
        %407 = vmatprep.mubr.f32.mxu0 0.0
        %408 = vmatmul.mubr.f32.gmra.mxu0 %v315
        %v409 = vpop.f32.mrf.mxu0
        %v410 = vadd.f32 0.0, %v409
        %v411 = vpop.f32.mrf.mxu0
        %412 = vmatprep.mubr.f32.mxu0 0.0
        %413 = vmatmul.mubr.f32.gmra.mxu0 %v316
        %v414 = vpop.f32.mrf.mxu0
        %v415 = vadd.f32 0.0, %v414
        %v416 = vpop.f32.mrf.mxu0
        %417 = vdwg.mxu0
        %v418 = vadd.f32 %v309, %v400
        %v419 = vadd.f32 %v310, %v405
        %v420 = vadd.f32 %v311, %v410
        %v421 = vadd.f32 %v312, %v415
        %422 = vst [vmem:[#allocation2] sm:$0xff] %v418
        %423 = vst [vmem:[#allocation2 + $0x8] sm:$0xff] %v419
        %424 = vst [vmem:[#allocation2 + $0x10] sm:$0xff] %v420
        %425 = vst [vmem:[#allocation2 + $0x18] sm:$0xff] %v421
        // Predicated region
        $region45: #{tpu_custom_call.1} parent=31 // pred_check
          %p426 = pneg %p301
        $region46: #{tpu_custom_call.1} parent=31 // pred_check_branch
          %428 = sbr.rel (%p426) target = $region48
        $region47: #{tpu_custom_call.1} parent=31 // pred_region
          %v429 = vld [vmem:[#allocation2] sm:$0xff]
          %v430 = vld [vmem:[#allocation2 + $0x8] sm:$0xff]
          %v431 = vld [vmem:[#allocation2 + $0x10] sm:$0xff]
          %v432 = vld [vmem:[#allocation2 + $0x18] sm:$0xff]
          %v433 = vld [vmem:[%s299] sm:$0x1]
          %v435 = vlaneseq
          %v436 = vshrl.u32 %v435, 7
          %v437 = vsub.s32 0, %v436
          %v438 = vrot.slane %v433, %v437
          %v440 = vadd.f32 %v429, %v438
          %v441 = vadd.f32 %v430, %v438
          %v442 = vadd.f32 %v431, %v438
          %v443 = vadd.f32 %v432, %v438
          %444 = vst [vmem:[%s291] sm:$0xff] %v440
          %445 = vst [vmem:[%s291 + $0x8] sm:$0xff] %v441
          %446 = vst [vmem:[%s291 + $0x10] sm:$0xff] %v442
          %447 = vst [vmem:[%s291 + $0x18] sm:$0xff] %v443
        $region48: #{tpu_custom_call.1} parent=31 // pred_fallthru
          _
        %s448 = sand.u32 %s149, 1
        %s449 = scalar_lea.sflag [#allocation5], %s448
        %s450 = sand.u32 %s149, 1
        %s451 = smul.addr %s450, 32
        %s452 = scalar_lea.vmem [#allocation8], %s451
        // Predicated region
        $region49: #{tpu_custom_call.1} parent=31 // pred_check
          %p453 = pneg %p159
        $region50: #{tpu_custom_call.1} parent=31 // pred_check_branch
          %455 = sbr.rel (%p453) target = $region52
        $region51: #{tpu_custom_call.1} parent=31 // pred_region
          %s456 = smul.u32 4, %s30
          %s458 = ssub.s32 512, 512
          %459 = vsyncadd %s449, %s458
          %s460 = sadd.s32 %s31, %s456
          %s461 = smul.addr %s29, 4
          %s462 = sadd.s32 %s460, %s461
          %s463 = smul.addr %s462, 128
          %s464 = scalar_lea.hbm %s3, %s463
          %s465 = sshll.u32 %s452, 4
          %s466 = int_to_ptr.vmem [resolvable:$true] %s465
          %471 = dma.vmem_to_hbm [thread:$0]  %s466, 512, %s464, %s449, 128, 128, 8
        $region52: #{tpu_custom_call.1} parent=31 // pred_fallthru
          _
      $region32: #{tpu_custom_call.1} parent=5 // pred_fallthru
        _
      %p472 = scmp.le.s32.totalorder 2, %s18
      // Predicated region
      $region53: #{tpu_custom_call.1} parent=5 // pred_check
        %p473 = pneg %p472
      $region54: #{tpu_custom_call.1} parent=5 // pred_check_branch
        %475 = sbr.rel (%p473) target = $region56
      $region55: #{tpu_custom_call.1} parent=5 // pred_region
        %s476 = ssub.s32 %s18, 2
        // Predicated region
        $region57: #{tpu_custom_call.1} parent=55 // pred_check
          %p477 = pneg %p165
        $region58: #{tpu_custom_call.1} parent=55 // pred_check_branch
          %479 = sbr.rel (%p477) target = $region60
        $region59: #{tpu_custom_call.1} parent=55 // pred_region
          %s480 = sand.u32 %s150, 1
          %s481 = scalar_lea.sflag [#allocation5], %s480
          %s482 = sand.u32 %s150, 1
          %s483 = smul.addr %s482, 32
          %s484 = scalar_lea.vmem [#allocation8], %s483
          %485 = dma.done %s481, 512
        $region60: #{tpu_custom_call.1} parent=55 // pred_fallthru
          _
      $region56: #{tpu_custom_call.1} parent=5 // pred_fallthru
        _
    $region6: #{tpu_custom_call.1} parent=1 // loop_footer
      %s22 = sadd.s32 1, %s18
    $region7: #{tpu_custom_call.1} parent=1 // loop_footer_branch
      %17 = sbr.rel target = $region3
    $region8: #{tpu_custom_call.1} parent=1 // loop_exit
      _
    %486 = vsyncpa [#allocation4], 1
    %s487 = scalar_lea.sflag [#allocation4], 1
    %488 = vsyncpa %s487, 1
    %489 = vsyncpa [#allocation7], 1
    %s490 = scalar_lea.sflag [#allocation7], 1
    %491 = vsyncpa %s490, 1
    %492 = vsyncpa [#allocation5], 1
    %s493 = scalar_lea.sflag [#allocation5], 1
    %494 = vsyncpa %s493, 1

</llo_original>
